<compile_context>
chip_gen: v6e
topology: v6e:2x2x1
jax: 0.10.0
libtpu: 0.0.40
codegen_flags: <defaults>
</compile_context>

<pallas_src>
import functools

import jax
import jax.numpy as jnp
from jax.experimental import pallas as pl
from jax.experimental.pallas import tpu as pltpu

EPS = 1e-4
_NORM_SCALE = 1.0 / 0.28           # (y - 0.7)/0.28  ==  y*_NORM_SCALE + _NORM_SHIFT
_NORM_SHIFT = -0.7 / 0.28
_MAX_LANE = 2048


def _chip_config(dtype):
    """Generation-aware (block bytes, vmem limit, min grid steps, compute dtype)."""
    kind = ""
    try:
        kind = jax.devices()[0].device_kind.lower()
    except Exception:
        pass

    if "v7" in kind:
        target_block_bytes = 6 * 1024 * 1024
        vmem_limit = 48 * 1024 * 1024
        min_grid_steps = 2            # 2 TensorCores: keep both busy via "parallel" axis
        bf16_native = True
    elif ("v5e" in kind) or ("v5 lite" in kind) or ("v5lite" in kind):
        target_block_bytes = 2 * 1024 * 1024
        vmem_limit = 24 * 1024 * 1024
        min_grid_steps = 1
        bf16_native = False           # v5e VPU/EUP have no bf16 path
    else:                             # v6e / v5p / v4 / unknown
        target_block_bytes = 4 * 1024 * 1024
        vmem_limit = 40 * 1024 * 1024
        min_grid_steps = 1
        bf16_native = "v6" in kind

    compute_dtype = jnp.bfloat16 if (dtype == jnp.bfloat16 and bf16_native) else jnp.float32
    return target_block_bytes, vmem_limit, min_grid_steps, compute_dtype


def _gaussian_act_kernel(alpha_ref, x_ref, o_ref, *, normalized: bool, compute_dtype):
    # alpha is a scalar parameter in SMEM; scalar-core math, once per grid step.
    alpha = alpha_ref[0]
    two_a2 = 2.0 * alpha * alpha
    # Mirror the torch branch: if |alpha| < eps, add eps to the denominator.
    denom = jnp.where(jnp.abs(alpha) < EPS, two_a2 + EPS, two_a2)
    neg_inv_denom = (-1.0 / denom).astype(compute_dtype)

    # Load native dtype, compute in compute_dtype (bf16 on v6e/v7x for bf16 I/O,
    # f32 otherwise), store back in the output dtype.
    x = x_ref[...].astype(compute_dtype)
    y = jnp.exp((x * x) * neg_inv_denom)
    if normalized:
        y = y * _NORM_SCALE + _NORM_SHIFT
    o_ref[...] = y.astype(o_ref.dtype)
    # TODO(synk): the reference prints host-side diagnostics on NaN / tiny alpha;
    # that is not expressible inside the kernel and does not affect outputs.


def gaussian_activation(x: jax.Array, alpha: jax.Array, *, normalized: bool = True) -> jax.Array:
    """Elementwise Gaussian activation. Works for any input shape/layout/dtype."""
    orig_shape = x.shape
    dtype = x.dtype
    itemsize = jnp.dtype(dtype).itemsize
    target_block_bytes, vmem_limit, min_steps, compute_dtype = _chip_config(dtype)

    flat = x.reshape(-1)                      # contiguous reshape: free
    n = flat.shape[0]

    # Widest lane width (multiple of 128, <= _MAX_LANE) that divides n -> the
    # 2-D reshape is also free (no pad copy).
    lane = None
    if n % 128 == 0:
        m = n // 128
        for d in range(min(m, _MAX_LANE // 128), 0, -1):
            if m % d == 0:
                lane = 128 * d
                break

    padded = False
    if lane is None:
        # Awkward element count (rare): pad the flat tail up to a multiple of 128.
        # TODO(synk): could instead mask the tail store in-kernel to avoid the
        # extra HBM pass from pad + slice.
        lane = 128
        n_pad = pl.cdiv(n, lane) * lane
        flat = jnp.pad(flat, (0, n_pad - n))
        padded = True

    x2d = flat.reshape(-1, lane)
    rows = x2d.shape[0]

    # dtype-native sublane multiple: 8 (f32), 16 (bf16/f16), 32 (int8/fp8).
    sub = max(8, 32 // itemsize)
    block_rows = max(sub, (target_block_bytes // (lane * itemsize)) // sub * sub)
    if block_rows >= rows:
        block_rows = rows                     # full extent (always legal)
        if min_steps >= 2 and rows >= 2 * sub:
            # Split into >= 2 steps so both v7x TensorCores get work.
            half = pl.cdiv(pl.cdiv(rows, 2), sub) * sub
            if half < rows:
                block_rows = half
    grid = (pl.cdiv(rows, block_rows),)       # partial last block is masked by Pallas

    alpha_arr = jnp.asarray(alpha, dtype=jnp.float32).reshape((1,))
    kernel = functools.partial(_gaussian_act_kernel,
                               normalized=normalized,
                               compute_dtype=compute_dtype)

    y2d = pl.pallas_call(
        kernel,
        out_shape=jax.ShapeDtypeStruct((rows, lane), dtype),
        grid_spec=pl.GridSpec(
            grid=grid,
            in_specs=[
                pl.BlockSpec(memory_space=pltpu.MemorySpace.SMEM),     # alpha scalar
                pl.BlockSpec((block_rows, lane), lambda i: (i, 0)),    # x tile
            ],
            out_specs=pl.BlockSpec((block_rows, lane), lambda i: (i, 0)),
        ),
        compiler_params=pltpu.CompilerParams(
            dimension_semantics=("parallel",),
            vmem_limit_bytes=vmem_limit,
        ),
        cost_estimate=pl.CostEstimate(
            flops=3 * n,
            transcendentals=n,
            bytes_accessed=2 * n * itemsize,
        ),
    )(alpha_arr, x2d)

    y = y2d.reshape(-1)
    if padded:                 # only in the padded fallback path
        y = y[:n]
    return y.reshape(orig_shape)


def _reference(x, alpha, normalized=True):
    """Pure-JAX reference mirroring the PyTorch forward (computed in f32)."""
    x = x.astype(jnp.float32)
    two_a2 = 2.0 * alpha * alpha
    denom = jnp.where(jnp.abs(alpha) < EPS, two_a2 + EPS, two_a2)
    y = jnp.exp(-(x ** 2) / denom)
    if normalized:
        y = (y - 0.7) / 0.28
    return y


if __name__ == "__main__":
    key = jax.random.PRNGKey(0)
    # Deterministic parameter init: nn.Parameter(torch.tensor(1.0))
    alpha = jnp.float32(1.0)

    # NCHW input, as in the PyTorch convention.
    x = jax.random.normal(key, (2, 4, 16, 16), dtype=jnp.float32)
    y = jax.block_until_ready(gaussian_activation(x, alpha, normalized=True))
    assert y.shape == x.shape and y.dtype == x.dtype
    assert jnp.allclose(y, _reference(x, alpha), atol=1e-5, rtol=1e-5)

    # Non-normalized path.
    y_raw = jax.block_until_ready(gaussian_activation(x, alpha, normalized=False))
    assert jnp.allclose(y_raw, _reference(x, alpha, normalized=False), atol=1e-5, rtol=1e-5)

    # bf16 I/O path: native-dtype compute on v6e/v7x, f32 compute on v5e.
    x_bf16 = x.astype(jnp.bfloat16)
    y_bf16 = jax.block_until_ready(gaussian_activation(x_bf16, alpha, normalized=True))
    assert y_bf16.dtype == jnp.bfloat16
    assert jnp.allclose(y_bf16.astype(jnp.float32), _reference(x_bf16, alpha),
                        atol=4e-2, rtol=4e-2)

    # Odd element count exercising the padded fallback path.
    x_odd = jax.random.normal(jax.random.PRNGKey(1), (3, 5, 7, 11), dtype=jnp.float32)
    y_odd = jax.block_until_ready(gaussian_activation(x_odd, alpha, normalized=True))
    assert jnp.allclose(y_odd, _reference(x_odd, alpha), atol=1e-5, rtol=1e-5)

    # Larger slab exercising a multi-step grid with a partial (masked) last block.
    x_big = jax.random.normal(jax.random.PRNGKey(2), (4, 64, 33, 128), dtype=jnp.float32)
    y_big = jax.block_until_ready(gaussian_activation(x_big, alpha, normalized=True))
    assert jnp.allclose(y_big, _reference(x_big, alpha), atol=1e-5, rtol=1e-5)

    print("KERNEL_OK")
</pallas_src>

<mosaic_0001>
module attributes {stable_mosaic.version = 11 : i64} {
  func.func @_gaussian_act_kernel(%arg0: i32, %arg1: memref<1xf32, #tpu.memory_space<smem>>, %arg2: memref<1x2048xf32, #tpu.memory_space<vmem>>, %arg3: memref<1x2048xf32, #tpu.memory_space<vmem>>) attributes {dimension_semantics = [#tpu.dimension_semantics<parallel>], iteration_bounds = array<i64: 1>, scalar_prefetch = 0 : i64, scratch_operands = 0 : i64, tpu.core_type = #tpu.core_type<tc>, window_params = [{transform_indices = @transform_0, window_bounds = array<i64: 1>}, {transform_indices = @transform_1, window_bounds = array<i64: 1, 2048>}, {transform_indices = @transform_2, window_bounds = array<i64: 1, 2048>}]} {
    %c0 = arith.constant 0 : index
    %0 = memref.load %arg1[%c0] : memref<1xf32, #tpu.memory_space<smem>>
    %cst = arith.constant 2.000000e+00 : f32
    %1 = arith.mulf %cst, %0 : f32
    %2 = arith.mulf %1, %0 : f32
    %3 = math.absf %0 : f32
    %cst_0 = arith.constant 9.99999974E-5 : f32
    %4 = arith.cmpf olt, %3, %cst_0 : f32
    %cst_1 = arith.constant 9.99999974E-5 : f32
    %5 = arith.addf %2, %cst_1 : f32
    %6 = arith.select %4, %5, %2 : f32
    %cst_2 = arith.constant -1.000000e+00 : f32
    %7 = arith.divf %cst_2, %6 : f32
    %c0_3 = arith.constant 0 : index
    %c0_4 = arith.constant 0 : index
    %8 = vector.load %arg2[%c0_3, %c0_4] : memref<1x2048xf32, #tpu.memory_space<vmem>>, vector<1x2048xf32>
    %9 = arith.mulf %8, %8 : vector<1x2048xf32>
    %10 = vector.broadcast %7 : f32 to vector<1x2048xf32>
    %11 = arith.mulf %9, %10 : vector<1x2048xf32>
    %12 = math.exp %11 : vector<1x2048xf32>
    %cst_5 = arith.constant 3.57142854 : f32
    %13 = vector.broadcast %cst_5 : f32 to vector<1x2048xf32>
    %14 = arith.mulf %12, %13 : vector<1x2048xf32>
    %cst_6 = arith.constant -2.500000e+00 : f32
    %15 = vector.broadcast %cst_6 : f32 to vector<1x2048xf32>
    %16 = arith.addf %14, %15 : vector<1x2048xf32>
    %c0_7 = arith.constant 0 : index
    %c0_8 = arith.constant 0 : index
    %17 = vector.load %arg3[%c0_7, %c0_8] : memref<1x2048xf32, #tpu.memory_space<vmem>>, vector<1x2048xf32>
    tpu.vector_store %arg3[%c0_7, %c0_8], %16 {strides = array<i32>} : memref<1x2048xf32, #tpu.memory_space<vmem>>, vector<1x2048xf32>,
    return
  }
  func.func @transform_0(%arg0: i32) -> i32 {
    %c0_i32 = arith.constant 0 : i32
    %c0_i32_0 = arith.constant 0 : i32
    return %c0_i32 : i32
  }
  func.func @transform_1(%arg0: i32) -> (i32, i32) {
    %c0_i32 = arith.constant 0 : i32
    %c0_i32_0 = arith.constant 0 : i32
    return %arg0, %c0_i32 : i32, i32
  }
  func.func @transform_2(%arg0: i32) -> (i32, i32) {
    %c0_i32 = arith.constant 0 : i32
    %c0_i32_0 = arith.constant 0 : i32
    return %arg0, %c0_i32 : i32, i32
  }
}

</mosaic_0001>

<llo_original>
// kernel: tpu_custom_call.1
$region0: #{tpu_custom_call.1}
  #allocation0 [shape = 'u32[]', space=smem, size = 0x4, offset = 0x4, fixed_abs, tag = 'smem constant byte address 0x4 - core index']
  #allocation1 [shape = 'u32[144,128]{1,0:T(1,128)}', space=vmem, size = 0x12000, scoped, tag = 'internal scratch']
  #allocation2 [shape = 'f32[1]{0:T(128)S(6)}', space=smem, size = 0x200, scoped, tag = 'scoped memory for tpu_custom_call.1']
  %s0 = inlined_call_operand.<no memory space> [shape: f32[1], index: 0, kind: input, shape index: {}]
  %s1 = inlined_call_operand.hbm [shape: f32[1,2048], index: 1, kind: input, shape index: {}]
  %s2 = inlined_call_operand.hbm [shape: f32[1,2048], index: 2, kind: output, shape index: {}]
  %s3 = sld [smem:[#allocation0]]
  $region22: #{tpu_custom_call.1} parent=0
    _
  %s5 = ssub.s32 1, %s3
  %s6 = scalar_select 0, %s5, %s3
  %7 = sst [smem:[#allocation2]] %s0
  $region1: #{tpu_custom_call.1} parent=0
    #allocation3 [shape = 'u8[8192]{0}', space=vmem, size = 0x2000, scoped, tag = 'input window, operand 1, single buffered']
    #allocation4 [shape = 's32[1]{0}', space=sflag, size = 0x4, scoped, tag = 'scoped memory for tpu_custom_call.1']
    #allocation5 [shape = 's32[1]{0}', space=sflag, size = 0x4, scoped, tag = 'scoped memory for tpu_custom_call.1']
    #allocation6 [shape = 'u8[8192]{0}', space=vmem, size = 0x2000, scoped, tag = 'output window, operand 0, single buffered']
    %8 = vsyncpa [#allocation4], 0
    %9 = vsyncpa [#allocation5], 0
    // Predicated region
    $region2: #{tpu_custom_call.1} parent=1 // pred_check
      _
    $region3: #{tpu_custom_call.1} parent=1 // pred_check_branch
      %11 = sbr.rel (0) target = $region5
    $region4: #{tpu_custom_call.1} parent=1 // pred_region
      _
    $region5: #{tpu_custom_call.1} parent=1 // pred_fallthru
      _
    // Predicated region
    $region6: #{tpu_custom_call.1} parent=1 // pred_check
      _
    $region7: #{tpu_custom_call.1} parent=1 // pred_check_branch
      %13 = sbr.rel (0) target = $region9
    $region8: #{tpu_custom_call.1} parent=1 // pred_region
      %s15 = ssub.s32 256, 256
      %16 = vsyncadd [#allocation4], %s15
      %s18 = sshll.u32 [#allocation3], 4
      %s19 = int_to_ptr.vmem [resolvable:$true] %s18
      %21 = dma.hbm_to_vmem [thread:$0]  %s1, 256, %s19, [#allocation4]
    $region9: #{tpu_custom_call.1} parent=1 // pred_fallthru
      _
    // Predicated region
    $region10: #{tpu_custom_call.1} parent=1 // pred_check
      _
    $region11: #{tpu_custom_call.1} parent=1 // pred_check_branch
      %23 = sbr.rel (0) target = $region13
    $region12: #{tpu_custom_call.1} parent=1 // pred_region
      %24 = dma.done [#allocation4], 256
    $region13: #{tpu_custom_call.1} parent=1 // pred_fallthru
      _
    %s25 = sld [smem:[#allocation2]]
    %s26 = smul.f32 %s25, 2.0
    %s27 = smul.f32 %s26, %s25
    %s28 = sand.u32 2147483647, %s25
    %p29 = scmp.lt.f32.partialorder %s28, 0.0001
    %s30 = sadd.f32 %s27, 0.0001
    %s31 = scalar_select %p29, %s30, %s27
    %v32 = vstv %s31
    %v33 = vrcp.pop %v32
    %s34 = vtos %v33
    %s35 = smul.f32 -1.0, %s34
    %v36 = vld [vmem:[#allocation3] sm:$0xff]
    %v37 = vld [vmem:[#allocation3 + $0x8] sm:$0xff]
    %v38 = vmul.f32 %v36, %v36
    %v39 = vmul.f32 %v37, %v37
    %v40 = vstv %s35
    %v41 = vmul.f32 %v38, %v40
    %v42 = vmul.f32 %v39, %v40
    %v43 = vmul.f32 %v41, 1.442695
    %v44 = vpow.pop %v43
    %v45 = vmul.f32 %v42, 1.442695
    %v46 = vpow.pop %v45
    %v47 = vmul.f32 %v44, 3.5714285
    %v48 = vmul.f32 %v46, 3.5714285
    %v49 = vadd.f32 %v47, -2.5
    %v50 = vadd.f32 %v48, -2.5
    %51 = vst [vmem:[#allocation6] sm:$0xff] %v49
    %52 = vst [vmem:[#allocation6 + $0x8] sm:$0xff] %v50
    // Predicated region
    $region14: #{tpu_custom_call.1} parent=1 // pred_check
      _
    $region15: #{tpu_custom_call.1} parent=1 // pred_check_branch
      %54 = sbr.rel (0) target = $region17
    $region16: #{tpu_custom_call.1} parent=1 // pred_region
      %s56 = ssub.s32 256, 256
      %57 = vsyncadd [#allocation5], %s56
      %s59 = sshll.u32 [#allocation6], 4
      %s60 = int_to_ptr.vmem [resolvable:$true] %s59
      %62 = dma.vmem_to_hbm [thread:$0]  %s60, 256, %s2, [#allocation5]
    $region17: #{tpu_custom_call.1} parent=1 // pred_fallthru
      _
    // Predicated region
    $region18: #{tpu_custom_call.1} parent=1 // pred_check
      _
    $region19: #{tpu_custom_call.1} parent=1 // pred_check_branch
      %64 = sbr.rel (0) target = $region21
    $region20: #{tpu_custom_call.1} parent=1 // pred_region
      %65 = dma.done [#allocation5], 256
    $region21: #{tpu_custom_call.1} parent=1 // pred_fallthru
      _
    %66 = vsyncpa [#allocation4], 1
    %67 = vsyncpa [#allocation5], 1

</llo_original>
